<compile_context>
chip_gen: v7x
topology: tpu7x:2x2x1
jax: 0.10.0
libtpu: 0.0.40
codegen_flags: <defaults>
</compile_context>

<pallas_src>
import functools

import jax
import jax.numpy as jnp
from jax.experimental import pallas as pl
from jax.experimental.pallas import tpu as pltpu


def _round_up(x, m):
    return (x + m - 1) // m * m


def _mdn_kernel(x_ref,
                w1_ref, b1_ref,
                w2_ref, b2_ref,
                w3_ref, b3_ref,
                wh_ref, bh_ref,
                out_ref,
                *, n_gaussians, gauss_out):
    cdt = w1_ref.dtype            # MXU input dtype (bf16 default, f32 supported)
    G = n_gaussians
    GO = gauss_out
    Np = wh_ref.shape[1]

    # x stays in HBM at its true (narrow) feature width / caller dtype; the
    # compute-dtype cast happens here so the wrapper never rewrites x.
    x = x_ref[...].astype(cdt)

    # fc1/fc2/fc3 -> relu (f32 accumulate, f32 elementwise, re-narrow for MXU)
    h = jnp.dot(x, w1_ref[...], preferred_element_type=jnp.float32) + b1_ref[...]
    h = jnp.maximum(h, 0.0).astype(cdt)
    h = jnp.dot(h, w2_ref[...], preferred_element_type=jnp.float32) + b2_ref[...]
    h = jnp.maximum(h, 0.0).astype(cdt)
    h = jnp.dot(h, w3_ref[...], preferred_element_type=jnp.float32) + b3_ref[...]
    h = jnp.maximum(h, 0.0).astype(cdt)

    # Single fused head matmul: cols [0,G)=pi logits, [G,G+GO)=mu,
    # [G+GO,G+2GO)=log-sigma, rest = zero padding.
    raw = jnp.dot(h, wh_ref[...], preferred_element_type=jnp.float32) + bh_ref[...]

    # Lane masks from one (1, Np) iota, broadcast against (TB, Np).
    col = jax.lax.broadcasted_iota(jnp.int32, (1, Np), 1)
    is_pi = col < G
    is_mu = (col >= G) & (col < G + GO)
    is_sg = (col >= G + GO) & (col < G + 2 * GO)
    neg_inf = jnp.float32(-jnp.inf)

    # Softmax over the real pi lanes only (exp(-inf)=0 keeps pads out of denom).
    pi_logits = jnp.where(is_pi, raw, neg_inf)
    m = jnp.max(pi_logits, axis=-1, keepdims=True)
    pi_e = jnp.exp(pi_logits - m)
    denom = jnp.sum(pi_e, axis=-1, keepdims=True)
    pi_vals = pi_e * pl.reciprocal(denom, approx=True)

    # sigma = exp() restricted to its own lanes (avoids overflow on mu lanes).
    # TODO(synk): if a config ever makes Np > 128, statically slice the 128-lane
    # stripe(s) holding the pi / sigma columns before the exps to cut EUP work.
    sg_vals = jnp.exp(jnp.where(is_sg, raw, neg_inf))
    mu_vals = jnp.where(is_mu, raw, 0.0)

    out = pi_vals + mu_vals + sg_vals          # lane groups are disjoint

    # Feature-major store: (Cp, TB) f32 slab instead of (TB, 128) — ~4x less
    # HBM write traffic.  The transpose rides the XLU slot (slack when mem-bound).
    out_t = jnp.transpose(out)
    out_ref[...] = out_t[: out_ref.shape[0], :].astype(out_ref.dtype)


def pack_params(p, input_size, hidden_size, output_size, n_gaussians,
                compute_dtype=jnp.bfloat16):
    """Fuse the three heads; pad hidden/head lane dims to multiples of 128.

    The input feature dim is left at its TRUE width (x is never lane-padded);
    compute_dtype=bf16 is the default and the recommended (only sensible)
    setting on v5e.
    """
    I, H, G, O = input_size, hidden_size, n_gaussians, output_size
    GO = G * O
    Hp = _round_up(H, 128)
    Np = _round_up(G + 2 * GO, 128)

    def pad_w(w, rows, cols):
        return jnp.pad(w, ((0, rows - w.shape[0]), (0, cols - w.shape[1]))
                       ).astype(compute_dtype)

    def pad_b(b, cols):
        return jnp.pad(b, ((0, 0), (0, cols - b.shape[1]))).astype(jnp.float32)

    wh = jnp.concatenate([p["wpi"], p["wmu"], p["wsg"]], axis=1)   # [H, G+2GO]
    bh = jnp.concatenate([p["bpi"], p["bmu"], p["bsg"]], axis=1)

    return dict(
        w1=pad_w(p["w1"], I, Hp),  b1=pad_b(p["b1"], Hp),   # no row pad for w1
        w2=pad_w(p["w2"], Hp, Hp), b2=pad_b(p["b2"], Hp),
        w3=pad_w(p["w3"], Hp, Hp), b3=pad_b(p["b3"], Hp),
        wh=pad_w(wh, Hp, Np),      bh=pad_b(bh, Np),
    )


def mdn_decay_net_forward(x, packed, n_gaussians, output_size, *, block_b=2048):
    """Full MDNDecayNet forward pass in one Pallas call (batch-tiled 1-D grid)."""
    B, I = x.shape
    G, O = n_gaussians, output_size
    GO = G * O
    C = G + 2 * GO

    assert packed["w1"].shape[0] == I, "packed params built for different input_size"
    Hp = packed["w1"].shape[1]
    Np = packed["wh"].shape[1]
    Cp = _round_up(C, 8)              # feature-major output sublane rows

    # Batch tiling:
    #  * large batches: big tiles (block_b rows) to amortize per-grid-step
    #    overhead, capped so nb >= 2 (keeps both v7x TensorCores busy);
    #  * small batches: one full-extent block (always layout-legal).
    # No batch padding copy anywhere: a partial last block is handled by Pallas
    # (OOB output lanes are dropped; garbage rows only feed discarded math).
    if B < 1024 and B <= block_b:
        TB = B
    else:
        TB = max(min(_round_up(block_b, 128), _round_up(pl.cdiv(B, 2), 128)), 128)
    nb = pl.cdiv(B, TB)

    kernel = functools.partial(_mdn_kernel, n_gaussians=G, gauss_out=GO)

    def resident(shape):              # weights / biases: same block every step
        return pl.BlockSpec(shape, lambda i: (0, 0))

    weight_bytes = sum(int(v.size) * v.dtype.itemsize for v in packed.values())
    x_blk_bytes = TB * I * x.dtype.itemsize
    out_blk_bytes = Cp * TB * 4
    live_temp_bytes = 10 * TB * max(Hp, Np) * 4        # h/raw/epilogue/transpose temps
    vmem_needed = weight_bytes + 2 * (x_blk_bytes + out_blk_bytes) + live_temp_bytes
    # <= 48 MiB keeps headroom on v7x's 64 MiB physical VMEM; >= 32 MiB floor.
    vmem_limit = int(min(max(vmem_needed, 32 * 1024 * 1024), 48 * 1024 * 1024))

    cost = pl.CostEstimate(
        flops=int(2 * B * (I * Hp + 2 * Hp * Hp + Hp * Np)),
        transcendentals=int(2 * B * Np),
        bytes_accessed=int(B * I * x.dtype.itemsize + weight_bytes + Cp * B * 4),
    )

    out = pl.pallas_call(
        kernel,
        out_shape=jax.ShapeDtypeStruct((Cp, B), jnp.float32),
        grid=(nb,),
        in_specs=[
            pl.BlockSpec((TB, I), lambda i: (i, 0)),        # x at true feature width
            resident((I, Hp)),  resident((1, Hp)),
            resident((Hp, Hp)), resident((1, Hp)),
            resident((Hp, Hp)), resident((1, Hp)),
            resident((Hp, Np)), resident((1, Np)),
        ],
        out_specs=pl.BlockSpec((Cp, TB), lambda i: (0, i)),  # feature-major slab
        compiler_params=pltpu.CompilerParams(
            dimension_semantics=("parallel",),               # megacore batch split
            vmem_limit_bytes=vmem_limit,
        ),
        cost_estimate=cost,
    )(x,
      packed["w1"], packed["b1"],
      packed["w2"], packed["b2"],
      packed["w3"], packed["b3"],
      packed["wh"], packed["bh"])

    pi = out[:G, :].T
    mu = out[G:G + GO, :].T.reshape(B, G, O)
    sigma = out[G + GO:G + 2 * GO, :].T.reshape(B, G, O)
    return pi, mu, sigma


def init_params(key, input_size, hidden_size, output_size, n_gaussians):
    """Deterministic synthetic parameters (weights stored [in, out])."""
    ks = jax.random.split(key, 12)
    G, O = n_gaussians, output_size

    def lin(kw, kb, fan_in, fan_out):
        scale = 1.0 / jnp.sqrt(jnp.float32(fan_in))
        w = jax.random.uniform(kw, (fan_in, fan_out), jnp.float32, -scale, scale)
        b = jax.random.uniform(kb, (1, fan_out), jnp.float32, -scale, scale)
        return w, b

    w1, b1 = lin(ks[0], ks[1], input_size, hidden_size)
    w2, b2 = lin(ks[2], ks[3], hidden_size, hidden_size)
    w3, b3 = lin(ks[4], ks[5], hidden_size, hidden_size)
    wpi, bpi = lin(ks[6], ks[7], hidden_size, G)
    wmu, bmu = lin(ks[8], ks[9], hidden_size, G * O)
    wsg, bsg = lin(ks[10], ks[11], hidden_size, G * O)

    return dict(w1=w1, b1=b1, w2=w2, b2=b2, w3=w3, b3=b3,
                wpi=wpi, bpi=bpi, wmu=wmu, bmu=bmu, wsg=wsg, bsg=bsg)


def _reference_forward(x, p, n_gaussians, output_size):
    """Pure-JAX f32 reference mirroring the PyTorch forward."""
    h = jax.nn.relu(x @ p["w1"] + p["b1"])
    h = jax.nn.relu(h @ p["w2"] + p["b2"])
    h = jax.nn.relu(h @ p["w3"] + p["b3"])
    pi = jax.nn.softmax(h @ p["wpi"] + p["bpi"], axis=1)
    mu = (h @ p["wmu"] + p["bmu"]).reshape(-1, n_gaussians, output_size)
    sigma = jnp.exp(h @ p["wsg"] + p["bsg"]).reshape(-1, n_gaussians, output_size)
    return pi, mu, sigma


if __name__ == "__main__":
    input_size, hidden_size, output_size, n_gaussians = 16, 32, 3, 4

    key = jax.random.PRNGKey(0)
    kx, kp, kx2 = jax.random.split(key, 3)
    params = init_params(kp, input_size, hidden_size, output_size, n_gaussians)

    fwd = jax.jit(functools.partial(mdn_decay_net_forward,
                                    n_gaussians=n_gaussians,
                                    output_size=output_size))

    # ---- small batch, single full-extent block -------------------------------
    batch = 8
    x = jax.random.normal(kx, (batch, input_size), dtype=jnp.float32)
    pi_r, mu_r, sg_r = _reference_forward(x, params, n_gaussians, output_size)

    # f32 MXU path (tight tolerances; pi relaxed for the approx reciprocal)
    packed_f32 = pack_params(params, input_size, hidden_size, output_size,
                             n_gaussians, compute_dtype=jnp.float32)
    pi, mu, sigma = fwd(x, packed_f32)
    jax.block_until_ready((pi, mu, sigma))
    assert pi.shape == (batch, n_gaussians)
    assert mu.shape == (batch, n_gaussians, output_size)
    assert sigma.shape == (batch, n_gaussians, output_size)
    assert jnp.allclose(pi, pi_r, atol=2e-3)
    assert jnp.allclose(mu, mu_r, atol=1e-4)
    assert jnp.allclose(sigma, sg_r, atol=1e-3, rtol=1e-3)

    # bf16 MXU path (default throughput mode; required choice on v5e)
    packed_bf16 = pack_params(params, input_size, hidden_size, output_size,
                              n_gaussians)          # compute_dtype defaults to bf16
    pi_b, mu_b, sg_b = fwd(x, packed_bf16)
    jax.block_until_ready((pi_b, mu_b, sg_b))
    assert jnp.allclose(pi_b, pi_r, atol=5e-2, rtol=5e-2)
    assert jnp.allclose(mu_b, mu_r, atol=5e-2, rtol=5e-2)
    assert jnp.allclose(sg_b, sg_r, atol=5e-2, rtol=5e-2)

    # ---- ragged multi-block batch (pipelined grid + partial last block) ------
    batch2 = 300
    x2 = jax.random.normal(kx2, (batch2, input_size), dtype=jnp.float32)
    pi2_r, mu2_r, sg2_r = _reference_forward(x2, params, n_gaussians, output_size)

    fwd_tiled = jax.jit(functools.partial(mdn_decay_net_forward,
                                          n_gaussians=n_gaussians,
                                          output_size=output_size,
                                          block_b=128))
    pi2, mu2, sg2 = fwd_tiled(x2, packed_f32)
    jax.block_until_ready((pi2, mu2, sg2))
    assert pi2.shape == (batch2, n_gaussians)
    assert mu2.shape == (batch2, n_gaussians, output_size)
    assert sg2.shape == (batch2, n_gaussians, output_size)
    assert jnp.allclose(pi2, pi2_r, atol=2e-3)
    assert jnp.allclose(mu2, mu2_r, atol=5e-4)
    assert jnp.allclose(sg2, sg2_r, atol=2e-3, rtol=2e-3)

    print("KERNEL_OK")
</pallas_src>

<mosaic_0001>
module attributes {stable_mosaic.version = 11 : i64} {
  func.func @_mdn_kernel(%arg0: i32, %arg1: memref<8x16xf32, #tpu.memory_space<vmem>>, %arg2: memref<16x128xf32, #tpu.memory_space<vmem>>, %arg3: memref<1x128xf32, #tpu.memory_space<vmem>>, %arg4: memref<128x128xf32, #tpu.memory_space<vmem>>, %arg5: memref<1x128xf32, #tpu.memory_space<vmem>>, %arg6: memref<128x128xf32, #tpu.memory_space<vmem>>, %arg7: memref<1x128xf32, #tpu.memory_space<vmem>>, %arg8: memref<128x128xf32, #tpu.memory_space<vmem>>, %arg9: memref<1x128xf32, #tpu.memory_space<vmem>>, %arg10: memref<32x8xf32, #tpu.memory_space<vmem>>) attributes {dimension_semantics = [#tpu.dimension_semantics<parallel>], iteration_bounds = array<i64: 1>, scalar_prefetch = 0 : i64, scratch_operands = 0 : i64, tpu.core_type = #tpu.core_type<tc>, window_params = [{transform_indices = @transform_0, window_bounds = array<i64: 8, 16>}, {pipeline_mode = #tpu.pipeline_mode<synchronous>, transform_indices = @transform_1, window_bounds = array<i64: 16, 128>}, {pipeline_mode = #tpu.pipeline_mode<synchronous>, transform_indices = @transform_2, window_bounds = array<i64: 1, 128>}, {pipeline_mode = #tpu.pipeline_mode<synchronous>, transform_indices = @transform_3, window_bounds = array<i64: 128, 128>}, {pipeline_mode = #tpu.pipeline_mode<synchronous>, transform_indices = @transform_4, window_bounds = array<i64: 1, 128>}, {pipeline_mode = #tpu.pipeline_mode<synchronous>, transform_indices = @transform_5, window_bounds = array<i64: 128, 128>}, {pipeline_mode = #tpu.pipeline_mode<synchronous>, transform_indices = @transform_6, window_bounds = array<i64: 1, 128>}, {pipeline_mode = #tpu.pipeline_mode<synchronous>, transform_indices = @transform_7, window_bounds = array<i64: 128, 128>}, {pipeline_mode = #tpu.pipeline_mode<synchronous>, transform_indices = @transform_8, window_bounds = array<i64: 1, 128>}, {transform_indices = @transform_9, window_bounds = array<i64: 32, 8>}]} {
    %c0 = arith.constant 0 : index
    %c0_0 = arith.constant 0 : index
    %0 = vector.load %arg1[%c0, %c0_0] : memref<8x16xf32, #tpu.memory_space<vmem>>, vector<8x16xf32>
    %c0_1 = arith.constant 0 : index
    %c0_2 = arith.constant 0 : index
    %1 = vector.load %arg2[%c0_1, %c0_2] : memref<16x128xf32, #tpu.memory_space<vmem>>, vector<16x128xf32>
    %cst = arith.constant dense<0.000000e+00> : vector<8x128xf32>
    %2 = tpu.matmul %0, %1, %cst {dimension_numbers = #tpu.dot_dimension_numbers<[1], [0], [0], [1], [0, 0, 1, 1], [], []>} : vector<8x16xf32>, vector<16x128xf32>, vector<8x128xf32> -> vector<8x128xf32>
    %c0_3 = arith.constant 0 : index
    %c0_4 = arith.constant 0 : index
    %3 = vector.load %arg3[%c0_3, %c0_4] : memref<1x128xf32, #tpu.memory_space<vmem>>, vector<1x128xf32>
    %4 = vector.broadcast %3 : vector<1x128xf32> to vector<8x128xf32>
    %5 = arith.addf %2, %4 : vector<8x128xf32>
    %cst_5 = arith.constant 0.000000e+00 : f32
    %6 = vector.broadcast %cst_5 : f32 to vector<8x128xf32>
    %7 = arith.maximumf %5, %6 : vector<8x128xf32>
    %c0_6 = arith.constant 0 : index
    %c0_7 = arith.constant 0 : index
    %8 = vector.load %arg4[%c0_6, %c0_7] : memref<128x128xf32, #tpu.memory_space<vmem>>, vector<128x128xf32>
    %cst_8 = arith.constant dense<0.000000e+00> : vector<8x128xf32>
    %9 = tpu.matmul %7, %8, %cst_8 {dimension_numbers = #tpu.dot_dimension_numbers<[1], [0], [0], [1], [0, 0, 1, 1], [], []>} : vector<8x128xf32>, vector<128x128xf32>, vector<8x128xf32> -> vector<8x128xf32>
    %c0_9 = arith.constant 0 : index
    %c0_10 = arith.constant 0 : index
    %10 = vector.load %arg5[%c0_9, %c0_10] : memref<1x128xf32, #tpu.memory_space<vmem>>, vector<1x128xf32>
    %11 = vector.broadcast %10 : vector<1x128xf32> to vector<8x128xf32>
    %12 = arith.addf %9, %11 : vector<8x128xf32>
    %cst_11 = arith.constant 0.000000e+00 : f32
    %13 = vector.broadcast %cst_11 : f32 to vector<8x128xf32>
    %14 = arith.maximumf %12, %13 : vector<8x128xf32>
    %c0_12 = arith.constant 0 : index
    %c0_13 = arith.constant 0 : index
    %15 = vector.load %arg6[%c0_12, %c0_13] : memref<128x128xf32, #tpu.memory_space<vmem>>, vector<128x128xf32>
    %cst_14 = arith.constant dense<0.000000e+00> : vector<8x128xf32>
    %16 = tpu.matmul %14, %15, %cst_14 {dimension_numbers = #tpu.dot_dimension_numbers<[1], [0], [0], [1], [0, 0, 1, 1], [], []>} : vector<8x128xf32>, vector<128x128xf32>, vector<8x128xf32> -> vector<8x128xf32>
    %c0_15 = arith.constant 0 : index
    %c0_16 = arith.constant 0 : index
    %17 = vector.load %arg7[%c0_15, %c0_16] : memref<1x128xf32, #tpu.memory_space<vmem>>, vector<1x128xf32>
    %18 = vector.broadcast %17 : vector<1x128xf32> to vector<8x128xf32>
    %19 = arith.addf %16, %18 : vector<8x128xf32>
    %cst_17 = arith.constant 0.000000e+00 : f32
    %20 = vector.broadcast %cst_17 : f32 to vector<8x128xf32>
    %21 = arith.maximumf %19, %20 : vector<8x128xf32>
    %c0_18 = arith.constant 0 : index
    %c0_19 = arith.constant 0 : index
    %22 = vector.load %arg8[%c0_18, %c0_19] : memref<128x128xf32, #tpu.memory_space<vmem>>, vector<128x128xf32>
    %cst_20 = arith.constant dense<0.000000e+00> : vector<8x128xf32>
    %23 = tpu.matmul %21, %22, %cst_20 {dimension_numbers = #tpu.dot_dimension_numbers<[1], [0], [0], [1], [0, 0, 1, 1], [], []>} : vector<8x128xf32>, vector<128x128xf32>, vector<8x128xf32> -> vector<8x128xf32>
    %c0_21 = arith.constant 0 : index
    %c0_22 = arith.constant 0 : index
    %24 = vector.load %arg9[%c0_21, %c0_22] : memref<1x128xf32, #tpu.memory_space<vmem>>, vector<1x128xf32>
    %25 = vector.broadcast %24 : vector<1x128xf32> to vector<8x128xf32>
    %26 = arith.addf %23, %25 : vector<8x128xf32>
    %27 = tpu.iota {dimensions = array<i32: 1>} : vector<1x128xi32>
    %c4_i32 = arith.constant 4 : i32
    %28 = vector.broadcast %c4_i32 : i32 to vector<1x128xi32>
    %29 = arith.cmpi slt, %27, %28 : vector<1x128xi32>
    %c4_i32_23 = arith.constant 4 : i32
    %30 = vector.broadcast %c4_i32_23 : i32 to vector<1x128xi32>
    %31 = arith.cmpi sge, %27, %30 : vector<1x128xi32>
    %c16_i32 = arith.constant 16 : i32
    %32 = vector.broadcast %c16_i32 : i32 to vector<1x128xi32>
    %33 = arith.cmpi slt, %27, %32 : vector<1x128xi32>
    %34 = arith.andi %31, %33 : vector<1x128xi1>
    %c16_i32_24 = arith.constant 16 : i32
    %35 = vector.broadcast %c16_i32_24 : i32 to vector<1x128xi32>
    %36 = arith.cmpi sge, %27, %35 : vector<1x128xi32>
    %c28_i32 = arith.constant 28 : i32
    %37 = vector.broadcast %c28_i32 : i32 to vector<1x128xi32>
    %38 = arith.cmpi slt, %27, %37 : vector<1x128xi32>
    %39 = arith.andi %36, %38 : vector<1x128xi1>
    %cst_25 = arith.constant 0xFF800000 : f32
    %40 = vector.shape_cast %29 : vector<1x128xi1> to vector<1x128xi1>
    %41 = vector.broadcast %40 : vector<1x128xi1> to vector<8x128xi1>
    %42 = vector.broadcast %cst_25 : f32 to vector<8x128xf32>
    %43 = arith.select %41, %26, %42 : vector<8x128xi1>, vector<8x128xf32>
    %cst_26 = arith.constant dense<0xFF800000> : vector<8xf32>
    %44 = vector.multi_reduction <maximumf>, %43, %cst_26 [1] : vector<8x128xf32> to vector<8xf32>
    %45 = vector.shape_cast %44 : vector<8xf32> to vector<8x1xf32>
    %46 = vector.broadcast %45 : vector<8x1xf32> to vector<8x128xf32>
    %47 = arith.subf %43, %46 : vector<8x128xf32>
    %48 = math.exp %47 : vector<8x128xf32>
    %cst_27 = arith.constant dense<0.000000e+00> : vector<8xf32>
    %49 = vector.multi_reduction <add>, %48, %cst_27 [1] : vector<8x128xf32> to vector<8xf32>
    %50 = vector.shape_cast %49 : vector<8xf32> to vector<8x1xf32>
    %51 = tpu.reciprocal %50 {approx = true} : vector<8x1xf32> -> vector<8x1xf32>
    %52 = vector.broadcast %51 : vector<8x1xf32> to vector<8x128xf32>
    %53 = arith.mulf %48, %52 : vector<8x128xf32>
    %cst_28 = arith.constant 0xFF800000 : f32
    %54 = vector.shape_cast %39 : vector<1x128xi1> to vector<1x128xi1>
    %55 = vector.broadcast %54 : vector<1x128xi1> to vector<8x128xi1>
    %56 = vector.broadcast %cst_28 : f32 to vector<8x128xf32>
    %57 = arith.select %55, %26, %56 : vector<8x128xi1>, vector<8x128xf32>
    %58 = math.exp %57 : vector<8x128xf32>
    %cst_29 = arith.constant 0.000000e+00 : f32
    %59 = vector.shape_cast %34 : vector<1x128xi1> to vector<1x128xi1>
    %60 = vector.broadcast %59 : vector<1x128xi1> to vector<8x128xi1>
    %61 = vector.broadcast %cst_29 : f32 to vector<8x128xf32>
    %62 = arith.select %60, %26, %61 : vector<8x128xi1>, vector<8x128xf32>
    %63 = arith.addf %53, %62 : vector<8x128xf32>
    %64 = arith.addf %63, %58 : vector<8x128xf32>
    %65 = tpu.transpose %64, [1, 0] : vector<8x128xf32> -> vector<128x8xf32>
    %66 = vector.extract_strided_slice %65 {offsets = [0, 0], sizes = [32, 8], strides = [1, 1]} : vector<128x8xf32> to vector<32x8xf32>
    %c0_30 = arith.constant 0 : index
    %c0_31 = arith.constant 0 : index
    %67 = vector.load %arg10[%c0_30, %c0_31] : memref<32x8xf32, #tpu.memory_space<vmem>>, vector<32x8xf32>
    tpu.vector_store %arg10[%c0_30, %c0_31], %66 {strides = array<i32>} : memref<32x8xf32, #tpu.memory_space<vmem>>, vector<32x8xf32>,
    return
  }
  func.func @transform_0(%arg0: i32) -> (i32, i32) {
    %c0_i32 = arith.constant 0 : i32
    %c0_i32_0 = arith.constant 0 : i32
    return %arg0, %c0_i32 : i32, i32
  }
  func.func @transform_1(%arg0: i32) -> (i32, i32) {
    %c0_i32 = arith.constant 0 : i32
    %c0_i32_0 = arith.constant 0 : i32
    %c0_i32_1 = arith.constant 0 : i32
    return %c0_i32, %c0_i32_0 : i32, i32
  }
  func.func @transform_2(%arg0: i32) -> (i32, i32) {
    %c0_i32 = arith.constant 0 : i32
    %c0_i32_0 = arith.constant 0 : i32
    %c0_i32_1 = arith.constant 0 : i32
    return %c0_i32, %c0_i32_0 : i32, i32
  }
  func.func @transform_3(%arg0: i32) -> (i32, i32) {
    %c0_i32 = arith.constant 0 : i32
    %c0_i32_0 = arith.constant 0 : i32
    %c0_i32_1 = arith.constant 0 : i32
    return %c0_i32, %c0_i32_0 : i32, i32
  }
  func.func @transform_4(%arg0: i32) -> (i32, i32) {
    %c0_i32 = arith.constant 0 : i32
    %c0_i32_0 = arith.constant 0 : i32
    %c0_i32_1 = arith.constant 0 : i32
    return %c0_i32, %c0_i32_0 : i32, i32
  }
  func.func @transform_5(%arg0: i32) -> (i32, i32) {
    %c0_i32 = arith.constant 0 : i32
    %c0_i32_0 = arith.constant 0 : i32
    %c0_i32_1 = arith.constant 0 : i32
    return %c0_i32, %c0_i32_0 : i32, i32
  }
  func.func @transform_6(%arg0: i32) -> (i32, i32) {
    %c0_i32 = arith.constant 0 : i32
    %c0_i32_0 = arith.constant 0 : i32
    %c0_i32_1 = arith.constant 0 : i32
    return %c0_i32, %c0_i32_0 : i32, i32
  }
  func.func @transform_7(%arg0: i32) -> (i32, i32) {
    %c0_i32 = arith.constant 0 : i32
    %c0_i32_0 = arith.constant 0 : i32
    %c0_i32_1 = arith.constant 0 : i32
    return %c0_i32, %c0_i32_0 : i32, i32
  }
  func.func @transform_8(%arg0: i32) -> (i32, i32) {
    %c0_i32 = arith.constant 0 : i32
    %c0_i32_0 = arith.constant 0 : i32
    %c0_i32_1 = arith.constant 0 : i32
    return %c0_i32, %c0_i32_0 : i32, i32
  }
  func.func @transform_9(%arg0: i32) -> (i32, i32) {
    %c0_i32 = arith.constant 0 : i32
    %c0_i32_0 = arith.constant 0 : i32
    return %c0_i32, %arg0 : i32, i32
  }
}

</mosaic_0001>

<llo_original>
// kernel: mdn_decay_net_forward.1
$region0: #{mdn_decay_net_forward.1}
  #allocation0 [shape = 'u32[]', space=smem, size = 0x4, offset = 0x4, fixed_abs, tag = 'smem constant byte address 0x4 - core index']
  #allocation1 [shape = 'u32[144,128]{1,0:T(1,128)}', space=vmem, size = 0x12000, scoped, tag = 'internal scratch']
  %s0 = inlined_call_operand.hbm [shape: f32[8,16], index: 0, kind: input, shape index: {}]
  %s1 = inlined_call_operand.vmem [shape: f32[16,128], index: 1, kind: input, shape index: {}]
  %s2 = inlined_call_operand.vmem [shape: f32[1,128], index: 2, kind: input, shape index: {}]
  %s3 = inlined_call_operand.hbm [shape: f32[128,128], index: 3, kind: input, shape index: {}]
  %s4 = inlined_call_operand.vmem [shape: f32[1,128], index: 4, kind: input, shape index: {}]
  %s5 = inlined_call_operand.hbm [shape: f32[128,128], index: 5, kind: input, shape index: {}]
  %s6 = inlined_call_operand.hbm [shape: f32[1,128], index: 6, kind: input, shape index: {}]
  %s7 = inlined_call_operand.hbm [shape: f32[128,128], index: 7, kind: input, shape index: {}]
  %s8 = inlined_call_operand.hbm [shape: f32[1,128], index: 8, kind: input, shape index: {}]
  %s9 = inlined_call_operand.vmem [shape: f32[32,8], index: 9, kind: output, shape index: {}]
  %s10 = sld [smem:[#allocation0]]
  $region70: #{mdn_decay_net_forward.1} parent=0
    _
  %s12 = ssub.s32 1, %s10
  %s13 = scalar_select 0, %s12, %s10
  $region1: #{mdn_decay_net_forward.1} parent=0
    #allocation2 [shape = 'u8[4096]{0}', space=vmem, size = 0x1000, scoped, tag = 'input window, operand 0, single buffered']
    #allocation3 [shape = 's32[1]{0}', space=sflag, size = 0x4, scoped, tag = 'scoped memory for mdn_decay_net_forward.1']
    #allocation4 [shape = 'u8[65536]{0}', space=vmem, size = 0x10000, scoped, tag = 'input window, operand 3, single buffered']
    #allocation5 [shape = 's32[1]{0}', space=sflag, size = 0x4, scoped, tag = 'scoped memory for mdn_decay_net_forward.1']
    #allocation6 [shape = 'u8[65536]{0}', space=vmem, size = 0x10000, scoped, tag = 'input window, operand 5, single buffered']
    #allocation7 [shape = 'u8[512]{0}', space=vmem, size = 0x400, scoped, tag = 'input window, operand 6, single buffered']
    #allocation8 [shape = 's32[1]{0}', space=sflag, size = 0x4, scoped, tag = 'scoped memory for mdn_decay_net_forward.1']
    #allocation9 [shape = 'u8[65536]{0}', space=vmem, size = 0x10000, scoped, tag = 'input window, operand 7, single buffered']
    #allocation10 [shape = 'u8[512]{0}', space=vmem, size = 0x400, scoped, tag = 'input window, operand 8, single buffered']
    #allocation11 [shape = 's32[1]{0}', space=sflag, size = 0x4, scoped, tag = 'scoped memory for mdn_decay_net_forward.1']
    %14 = vsyncpa [#allocation3], 0
    %15 = vsyncpa [#allocation5], 0
    %16 = vsyncpa [#allocation8], 0
    %17 = vsyncpa [#allocation11], 0
    // Predicated region
    $region2: #{mdn_decay_net_forward.1} parent=1 // pred_check
      _
    $region3: #{mdn_decay_net_forward.1} parent=1 // pred_check_branch
      %19 = sbr.rel (0) target = $region5
    $region4: #{mdn_decay_net_forward.1} parent=1 // pred_region
      %s21 = ssub.s32 128, 128
      %22 = vsyncadd [#allocation3], %s21
      %s24 = sshll.u32 [#allocation2], 4
      %s25 = int_to_ptr.vmem [resolvable:$true] %s24
      %27 = dma.hbm_to_vmem [thread:$0]  %s0, 128, %s25, [#allocation3]
    $region5: #{mdn_decay_net_forward.1} parent=1 // pred_fallthru
      _
    // Predicated region
    $region6: #{mdn_decay_net_forward.1} parent=1 // pred_check
      _
    $region7: #{mdn_decay_net_forward.1} parent=1 // pred_check_branch
      %29 = sbr.rel (0) target = $region9
    $region8: #{mdn_decay_net_forward.1} parent=1 // pred_region
      _
    $region9: #{mdn_decay_net_forward.1} parent=1 // pred_fallthru
      _
    // Predicated region
    $region10: #{mdn_decay_net_forward.1} parent=1 // pred_check
      _
    $region11: #{mdn_decay_net_forward.1} parent=1 // pred_check_branch
      %31 = sbr.rel (0) target = $region13
    $region12: #{mdn_decay_net_forward.1} parent=1 // pred_region
      _
    $region13: #{mdn_decay_net_forward.1} parent=1 // pred_fallthru
      _
    // Predicated region
    $region14: #{mdn_decay_net_forward.1} parent=1 // pred_check
      _
    $region15: #{mdn_decay_net_forward.1} parent=1 // pred_check_branch
      %33 = sbr.rel (0) target = $region17
    $region16: #{mdn_decay_net_forward.1} parent=1 // pred_region
      %s35 = ssub.s32 2048, 2048
      %36 = vsyncadd [#allocation5], %s35
      %s37 = sshll.u32 [#allocation4], 4
      %s38 = int_to_ptr.vmem [resolvable:$true] %s37
      %43 = dma.hbm_to_vmem [thread:$0]  %s3, 2048, %s38, [#allocation5], 128, 128, 8
    $region17: #{mdn_decay_net_forward.1} parent=1 // pred_fallthru
      _
    // Predicated region
    $region18: #{mdn_decay_net_forward.1} parent=1 // pred_check
      _
    $region19: #{mdn_decay_net_forward.1} parent=1 // pred_check_branch
      %45 = sbr.rel (0) target = $region21
    $region20: #{mdn_decay_net_forward.1} parent=1 // pred_region
      _
    $region21: #{mdn_decay_net_forward.1} parent=1 // pred_fallthru
      _
    // Predicated region
    $region22: #{mdn_decay_net_forward.1} parent=1 // pred_check
      _
    $region23: #{mdn_decay_net_forward.1} parent=1 // pred_check_branch
      %47 = sbr.rel (0) target = $region25
    $region24: #{mdn_decay_net_forward.1} parent=1 // pred_region
      %s49 = ssub.s32 2048, 2048
      %50 = vsyncadd [#allocation5], %s49
      %s51 = sshll.u32 [#allocation6], 4
      %s52 = int_to_ptr.vmem [resolvable:$true] %s51
      %57 = dma.hbm_to_vmem [thread:$0]  %s5, 2048, %s52, [#allocation5], 128, 128, 8
    $region25: #{mdn_decay_net_forward.1} parent=1 // pred_fallthru
      _
    // Predicated region
    $region26: #{mdn_decay_net_forward.1} parent=1 // pred_check
      _
    $region27: #{mdn_decay_net_forward.1} parent=1 // pred_check_branch
      %59 = sbr.rel (0) target = $region29
    $region28: #{mdn_decay_net_forward.1} parent=1 // pred_region
      %s61 = ssub.s32 16, 16
      %62 = vsyncadd [#allocation8], %s61
      %s64 = sshll.u32 [#allocation7], 4
      %s65 = int_to_ptr.vmem [resolvable:$true] %s64
      %67 = dma.hbm_to_vmem [thread:$0]  %s6, 16, %s65, [#allocation8]
    $region29: #{mdn_decay_net_forward.1} parent=1 // pred_fallthru
      _
    // Predicated region
    $region30: #{mdn_decay_net_forward.1} parent=1 // pred_check
      _
    $region31: #{mdn_decay_net_forward.1} parent=1 // pred_check_branch
      %69 = sbr.rel (0) target = $region33
    $region32: #{mdn_decay_net_forward.1} parent=1 // pred_region
      %s71 = ssub.s32 2048, 2048
      %72 = vsyncadd [#allocation8], %s71
      %s73 = sshll.u32 [#allocation9], 4
      %s74 = int_to_ptr.vmem [resolvable:$true] %s73
      %79 = dma.hbm_to_vmem [thread:$0]  %s7, 2048, %s74, [#allocation8], 128, 128, 8
    $region33: #{mdn_decay_net_forward.1} parent=1 // pred_fallthru
      _
    // Predicated region
    $region34: #{mdn_decay_net_forward.1} parent=1 // pred_check
      _
    $region35: #{mdn_decay_net_forward.1} parent=1 // pred_check_branch
      %81 = sbr.rel (0) target = $region37
    $region36: #{mdn_decay_net_forward.1} parent=1 // pred_region
      %s83 = ssub.s32 16, 16
      %84 = vsyncadd [#allocation11], %s83
      %s86 = sshll.u32 [#allocation10], 4
      %s87 = int_to_ptr.vmem [resolvable:$true] %s86
      %89 = dma.hbm_to_vmem [thread:$0]  %s8, 16, %s87, [#allocation11]
    $region37: #{mdn_decay_net_forward.1} parent=1 // pred_fallthru
      _
    // Predicated region
    $region38: #{mdn_decay_net_forward.1} parent=1 // pred_check
      _
    $region39: #{mdn_decay_net_forward.1} parent=1 // pred_check_branch
      %91 = sbr.rel (0) target = $region41
    $region40: #{mdn_decay_net_forward.1} parent=1 // pred_region
      %92 = dma.done [#allocation3], 128
    $region41: #{mdn_decay_net_forward.1} parent=1 // pred_fallthru
      _
    // Predicated region
    $region42: #{mdn_decay_net_forward.1} parent=1 // pred_check
      _
    $region43: #{mdn_decay_net_forward.1} parent=1 // pred_check_branch
      %94 = sbr.rel (0) target = $region45
    $region44: #{mdn_decay_net_forward.1} parent=1 // pred_region
      %95 = dma.done [#allocation5], 2048
    $region45: #{mdn_decay_net_forward.1} parent=1 // pred_fallthru
      _
    // Predicated region
    $region46: #{mdn_decay_net_forward.1} parent=1 // pred_check
      _
    $region47: #{mdn_decay_net_forward.1} parent=1 // pred_check_branch
      %97 = sbr.rel (0) target = $region49
    $region48: #{mdn_decay_net_forward.1} parent=1 // pred_region
      %98 = dma.done [#allocation5], 2048
    $region49: #{mdn_decay_net_forward.1} parent=1 // pred_fallthru
      _
    // Predicated region
    $region50: #{mdn_decay_net_forward.1} parent=1 // pred_check
      _
    $region51: #{mdn_decay_net_forward.1} parent=1 // pred_check_branch
      %100 = sbr.rel (0) target = $region53
    $region52: #{mdn_decay_net_forward.1} parent=1 // pred_region
      %101 = dma.done [#allocation8], 16
    $region53: #{mdn_decay_net_forward.1} parent=1 // pred_fallthru
      _
    // Predicated region
    $region54: #{mdn_decay_net_forward.1} parent=1 // pred_check
      _
    $region55: #{mdn_decay_net_forward.1} parent=1 // pred_check_branch
      %103 = sbr.rel (0) target = $region57
    $region56: #{mdn_decay_net_forward.1} parent=1 // pred_region
      %104 = dma.done [#allocation8], 2048
    $region57: #{mdn_decay_net_forward.1} parent=1 // pred_fallthru
      _
    // Predicated region
    $region58: #{mdn_decay_net_forward.1} parent=1 // pred_check
      _
    $region59: #{mdn_decay_net_forward.1} parent=1 // pred_check_branch
      %106 = sbr.rel (0) target = $region61
    $region60: #{mdn_decay_net_forward.1} parent=1 // pred_region
      %107 = dma.done [#allocation11], 16
    $region61: #{mdn_decay_net_forward.1} parent=1 // pred_fallthru
      _
    %v108 = vld [vmem:[#allocation2] sm:$0xff]
    %v109 = vld [vmem:[%s1] sm:$0xff]
    %v110 = vld [vmem:[%s1 + $0x8] sm:$0xff]
    %v111 = vld [vmem:[%s2] sm:$0x1]
    %v113 = vlaneseq
    %v114 = vshrl.u32 %v113, 7
    %v115 = vsub.s32 0, %v114
    %v116 = vrot.slane %v111, %v115
    %vm118 = vcmask 130048
    %v120 = vsel %vm118, %v108, 0
    %122 = vmatprep.subr.mxu0 0.0
    %123 = vmatpush1.msra.mxu0 %v109
    %124 = vmatprep.subr.mxu0 0.0
    %125 = vmatpush1.msra.mxu0 %v110
    %126 = vmatprep.subr.mxu0 0.0
    %127 = vmatpush1.msra.mxu0 0.0
    %128 = vmatprep.subr.mxu0 0.0
    %129 = vmatpush1.msra.mxu0 0.0
    %130 = vmatprep.subr.mxu0 0.0
    %131 = vmatpush1.msra.mxu0 0.0
    %132 = vmatprep.subr.mxu0 0.0
    %133 = vmatpush1.msra.mxu0 0.0
    %134 = vmatprep.subr.mxu0 0.0
    %135 = vmatpush1.msra.mxu0 0.0
    %136 = vmatprep.subr.mxu0 0.0
    %137 = vmatpush1.msra.mxu0 0.0
    %138 = vmatprep.subr.mxu0 0.0
    %139 = vmatpush1.msra.mxu0 0.0
    %140 = vmatprep.subr.mxu0 0.0
    %141 = vmatpush1.msra.mxu0 0.0
    %142 = vmatprep.subr.mxu0 0.0
    %143 = vmatpush1.msra.mxu0 0.0
    %144 = vmatprep.subr.mxu0 0.0
    %145 = vmatpush1.msra.mxu0 0.0
    %146 = vmatprep.subr.mxu0 0.0
    %147 = vmatpush1.msra.mxu0 0.0
    %148 = vmatprep.subr.mxu0 0.0
    %149 = vmatpush1.msra.mxu0 0.0
    %150 = vmatprep.subr.mxu0 0.0
    %151 = vmatpush1.msra.mxu0 0.0
    %152 = vmatprep.subr.mxu0 0.0
    %153 = vmatpush1.msra.mxu0 0.0
    %154 = vmatprep.subr.mxu0 0.0
    %155 = vmatpush1.msra.mxu0 0.0
    %156 = vmatprep.subr.mxu0 0.0
    %157 = vmatpush1.msra.mxu0 0.0
    %158 = vmatprep.subr.mxu0 0.0
    %159 = vmatpush1.msra.mxu0 0.0
    %160 = vmatprep.subr.mxu0 0.0
    %161 = vmatpush1.msra.mxu0 0.0
    %162 = vmatprep.subr.mxu0 0.0
    %163 = vmatpush1.msra.mxu0 0.0
    %164 = vmatprep.subr.mxu0 0.0
    %165 = vmatpush1.msra.mxu0 0.0
    %166 = vmatprep.subr.mxu0 0.0
    %167 = vmatpush1.msra.mxu0 0.0
    %168 = vmatprep.subr.mxu0 0.0
    %169 = vmatpush1.msra.mxu0 0.0
    %170 = vmatprep.subr.mxu0 0.0
    %171 = vmatpush1.msra.mxu0 0.0
    %172 = vmatprep.subr.mxu0 0.0
    %173 = vmatpush1.msra.mxu0 0.0
    %174 = vmatprep.subr.mxu0 0.0
    %175 = vmatpush1.msra.mxu0 0.0
    %176 = vmatprep.subr.mxu0 0.0
    %177 = vmatpush1.msra.mxu0 0.0
    %178 = vmatprep.subr.mxu0 0.0
    %179 = vmatpush1.msra.mxu0 0.0
    %180 = vmatprep.subr.mxu0 0.0
    %181 = vmatpush1.msra.mxu0 0.0
    %182 = vmatprep.subr.mxu0 0.0
    %183 = vmatpush1.msra.mxu0 0.0
    %184 = vmatprep.subr.mxu0 0.0
    %185 = vmatpush1.msra.mxu0 0.0
    %186 = vmatprep.mubr.f32.mxu0 0.0
    %187 = vmatmul.mubr.f32.gmra.mrb[0].mxu0 %v120
    %v188 = vpop.f32.mrb[0].mxu0
    %v189 = vadd.f32 %v116, %v188
    %v190 = vpop.f32.mrb[0].mxu0
    %191 = vdwg.mxu0
    %v192 = vmax.f32 %v189, 0.0
    %v193 = vld [vmem:[#allocation4] sm:$0xff]
    %v194 = vld [vmem:[#allocation4 + $0x8] sm:$0xff]
    %v195 = vld [vmem:[#allocation4 + $0x10] sm:$0xff]
    %v196 = vld [vmem:[#allocation4 + $0x18] sm:$0xff]
    %v197 = vld [vmem:[#allocation4 + $0x20] sm:$0xff]
    %v198 = vld [vmem:[#allocation4 + $0x28] sm:$0xff]
    %v199 = vld [vmem:[#allocation4 + $0x30] sm:$0xff]
    %v200 = vld [vmem:[#allocation4 + $0x38] sm:$0xff]
    %v201 = vld [vmem:[#allocation4 + $0x40] sm:$0xff]
    %v202 = vld [vmem:[#allocation4 + $0x48] sm:$0xff]
    %v203 = vld [vmem:[#allocation4 + $0x50] sm:$0xff]
    %v204 = vld [vmem:[#allocation4 + $0x58] sm:$0xff]
    %v205 = vld [vmem:[#allocation4 + $0x60] sm:$0xff]
    %v206 = vld [vmem:[#allocation4 + $0x68] sm:$0xff]
    %v207 = vld [vmem:[#allocation4 + $0x70] sm:$0xff]
    %v208 = vld [vmem:[#allocation4 + $0x78] sm:$0xff]
    %v209 = vld [vmem:[%s4] sm:$0x1]
    %v211 = vlaneseq
    %v212 = vshrl.u32 %v211, 7
    %v213 = vsub.s32 0, %v212
    %v214 = vrot.slane %v209, %v213
    %216 = vmatprep.subr.mxu0 0.0
    %217 = vmatpush1.msra.mxu0 %v193
    %218 = vmatprep.subr.mxu0 0.0
    %219 = vmatpush1.msra.mxu0 %v194
    %220 = vmatprep.subr.mxu0 0.0
    %221 = vmatpush1.msra.mxu0 %v195
    %222 = vmatprep.subr.mxu0 0.0
    %223 = vmatpush1.msra.mxu0 %v196
    %224 = vmatprep.subr.mxu0 0.0
    %225 = vmatpush1.msra.mxu0 %v197
    %226 = vmatprep.subr.mxu0 0.0
    %227 = vmatpush1.msra.mxu0 %v198
    %228 = vmatprep.subr.mxu0 0.0
    %229 = vmatpush1.msra.mxu0 %v199
    %230 = vmatprep.subr.mxu0 0.0
    %231 = vmatpush1.msra.mxu0 %v200
    %232 = vmatprep.subr.mxu0 0.0
    %233 = vmatpush1.msra.mxu0 %v201
    %234 = vmatprep.subr.mxu0 0.0
    %235 = vmatpush1.msra.mxu0 %v202
    %236 = vmatprep.subr.mxu0 0.0
    %237 = vmatpush1.msra.mxu0 %v203
    %238 = vmatprep.subr.mxu0 0.0
    %239 = vmatpush1.msra.mxu0 %v204
    %240 = vmatprep.subr.mxu0 0.0
    %241 = vmatpush1.msra.mxu0 %v205
    %242 = vmatprep.subr.mxu0 0.0
    %243 = vmatpush1.msra.mxu0 %v206
    %244 = vmatprep.subr.mxu0 0.0
    %245 = vmatpush1.msra.mxu0 %v207
    %246 = vmatprep.subr.mxu0 0.0
    %247 = vmatpush1.msra.mxu0 %v208
    %248 = vmatprep.subr.mxu0 0.0
    %249 = vmatpush1.msra.mxu0 0.0
    %250 = vmatprep.subr.mxu0 0.0
    %251 = vmatpush1.msra.mxu0 0.0
    %252 = vmatprep.subr.mxu0 0.0
    %253 = vmatpush1.msra.mxu0 0.0
    %254 = vmatprep.subr.mxu0 0.0
    %255 = vmatpush1.msra.mxu0 0.0
    %256 = vmatprep.subr.mxu0 0.0
    %257 = vmatpush1.msra.mxu0 0.0
    %258 = vmatprep.subr.mxu0 0.0
    %259 = vmatpush1.msra.mxu0 0.0
    %260 = vmatprep.subr.mxu0 0.0
    %261 = vmatpush1.msra.mxu0 0.0
    %262 = vmatprep.subr.mxu0 0.0
    %263 = vmatpush1.msra.mxu0 0.0
    %264 = vmatprep.subr.mxu0 0.0
    %265 = vmatpush1.msra.mxu0 0.0
    %266 = vmatprep.subr.mxu0 0.0
    %267 = vmatpush1.msra.mxu0 0.0
    %268 = vmatprep.subr.mxu0 0.0
    %269 = vmatpush1.msra.mxu0 0.0
    %270 = vmatprep.subr.mxu0 0.0
    %271 = vmatpush1.msra.mxu0 0.0
    %272 = vmatprep.subr.mxu0 0.0
    %273 = vmatpush1.msra.mxu0 0.0
    %274 = vmatprep.subr.mxu0 0.0
    %275 = vmatpush1.msra.mxu0 0.0
    %276 = vmatprep.subr.mxu0 0.0
    %277 = vmatpush1.msra.mxu0 0.0
    %278 = vmatprep.subr.mxu0 0.0
    %279 = vmatpush1.msra.mxu0 0.0
    %280 = vmatprep.mubr.f32.mxu0 0.0
    %281 = vmatmul.mubr.f32.gmra.mrb[0].mxu0 %v192
    %v282 = vpop.f32.mrb[0].mxu0
    %v283 = vadd.f32 %v214, %v282
    %v284 = vpop.f32.mrb[0].mxu0
    %285 = vdwg.mxu0
    %v286 = vmax.f32 %v283, 0.0
    %v287 = vld [vmem:[#allocation6] sm:$0xff]
    %v288 = vld [vmem:[#allocation6 + $0x8] sm:$0xff]
    %v289 = vld [vmem:[#allocation6 + $0x10] sm:$0xff]
    %v290 = vld [vmem:[#allocation6 + $0x18] sm:$0xff]
    %v291 = vld [vmem:[#allocation6 + $0x20] sm:$0xff]
    %v292 = vld [vmem:[#allocation6 + $0x28] sm:$0xff]
    %v293 = vld [vmem:[#allocation6 + $0x30] sm:$0xff]
    %v294 = vld [vmem:[#allocation6 + $0x38] sm:$0xff]
    %v295 = vld [vmem:[#allocation6 + $0x40] sm:$0xff]
    %v296 = vld [vmem:[#allocation6 + $0x48] sm:$0xff]
    %v297 = vld [vmem:[#allocation6 + $0x50] sm:$0xff]
    %v298 = vld [vmem:[#allocation6 + $0x58] sm:$0xff]
    %v299 = vld [vmem:[#allocation6 + $0x60] sm:$0xff]
    %v300 = vld [vmem:[#allocation6 + $0x68] sm:$0xff]
    %v301 = vld [vmem:[#allocation6 + $0x70] sm:$0xff]
    %v302 = vld [vmem:[#allocation6 + $0x78] sm:$0xff]
    %v303 = vld [vmem:[#allocation7] sm:$0x1]
    %v305 = vlaneseq
    %v306 = vshrl.u32 %v305, 7
    %v307 = vsub.s32 0, %v306
    %v308 = vrot.slane %v303, %v307
    %310 = vmatprep.subr.mxu0 0.0
    %311 = vmatpush1.msra.mxu0 %v287
    %312 = vmatprep.subr.mxu0 0.0
    %313 = vmatpush1.msra.mxu0 %v288
    %314 = vmatprep.subr.mxu0 0.0
    %315 = vmatpush1.msra.mxu0 %v289
    %316 = vmatprep.subr.mxu0 0.0
    %317 = vmatpush1.msra.mxu0 %v290
    %318 = vmatprep.subr.mxu0 0.0
    %319 = vmatpush1.msra.mxu0 %v291
    %320 = vmatprep.subr.mxu0 0.0
    %321 = vmatpush1.msra.mxu0 %v292
    %322 = vmatprep.subr.mxu0 0.0
    %323 = vmatpush1.msra.mxu0 %v293
    %324 = vmatprep.subr.mxu0 0.0
    %325 = vmatpush1.msra.mxu0 %v294
    %326 = vmatprep.subr.mxu0 0.0
    %327 = vmatpush1.msra.mxu0 %v295
    %328 = vmatprep.subr.mxu0 0.0
    %329 = vmatpush1.msra.mxu0 %v296
    %330 = vmatprep.subr.mxu0 0.0
    %331 = vmatpush1.msra.mxu0 %v297
    %332 = vmatprep.subr.mxu0 0.0
    %333 = vmatpush1.msra.mxu0 %v298
    %334 = vmatprep.subr.mxu0 0.0
    %335 = vmatpush1.msra.mxu0 %v299
    %336 = vmatprep.subr.mxu0 0.0
    %337 = vmatpush1.msra.mxu0 %v300
    %338 = vmatprep.subr.mxu0 0.0
    %339 = vmatpush1.msra.mxu0 %v301
    %340 = vmatprep.subr.mxu0 0.0
    %341 = vmatpush1.msra.mxu0 %v302
    %342 = vmatprep.subr.mxu0 0.0
    %343 = vmatpush1.msra.mxu0 0.0
    %344 = vmatprep.subr.mxu0 0.0
    %345 = vmatpush1.msra.mxu0 0.0
    %346 = vmatprep.subr.mxu0 0.0
    %347 = vmatpush1.msra.mxu0 0.0
    %348 = vmatprep.subr.mxu0 0.0
    %349 = vmatpush1.msra.mxu0 0.0
    %350 = vmatprep.subr.mxu0 0.0
    %351 = vmatpush1.msra.mxu0 0.0
    %352 = vmatprep.subr.mxu0 0.0
    %353 = vmatpush1.msra.mxu0 0.0
    %354 = vmatprep.subr.mxu0 0.0
    %355 = vmatpush1.msra.mxu0 0.0
    %356 = vmatprep.subr.mxu0 0.0
    %357 = vmatpush1.msra.mxu0 0.0
    %358 = vmatprep.subr.mxu0 0.0
    %359 = vmatpush1.msra.mxu0 0.0
    %360 = vmatprep.subr.mxu0 0.0
    %361 = vmatpush1.msra.mxu0 0.0
    %362 = vmatprep.subr.mxu0 0.0
    %363 = vmatpush1.msra.mxu0 0.0
    %364 = vmatprep.subr.mxu0 0.0
    %365 = vmatpush1.msra.mxu0 0.0
    %366 = vmatprep.subr.mxu0 0.0
    %367 = vmatpush1.msra.mxu0 0.0
    %368 = vmatprep.subr.mxu0 0.0
    %369 = vmatpush1.msra.mxu0 0.0
    %370 = vmatprep.subr.mxu0 0.0
    %371 = vmatpush1.msra.mxu0 0.0
    %372 = vmatprep.subr.mxu0 0.0
    %373 = vmatpush1.msra.mxu0 0.0
    %374 = vmatprep.mubr.f32.mxu0 0.0
    %375 = vmatmul.mubr.f32.gmra.mrb[0].mxu0 %v286
    %v376 = vpop.f32.mrb[0].mxu0
    %v377 = vadd.f32 %v308, %v376
    %v378 = vpop.f32.mrb[0].mxu0
    %379 = vdwg.mxu0
    %v380 = vmax.f32 %v377, 0.0
    %v381 = vld [vmem:[#allocation9] sm:$0xff]
    %v382 = vld [vmem:[#allocation9 + $0x8] sm:$0xff]
    %v383 = vld [vmem:[#allocation9 + $0x10] sm:$0xff]
    %v384 = vld [vmem:[#allocation9 + $0x18] sm:$0xff]
    %v385 = vld [vmem:[#allocation9 + $0x20] sm:$0xff]
    %v386 = vld [vmem:[#allocation9 + $0x28] sm:$0xff]
    %v387 = vld [vmem:[#allocation9 + $0x30] sm:$0xff]
    %v388 = vld [vmem:[#allocation9 + $0x38] sm:$0xff]
    %v389 = vld [vmem:[#allocation9 + $0x40] sm:$0xff]
    %v390 = vld [vmem:[#allocation9 + $0x48] sm:$0xff]
    %v391 = vld [vmem:[#allocation9 + $0x50] sm:$0xff]
    %v392 = vld [vmem:[#allocation9 + $0x58] sm:$0xff]
    %v393 = vld [vmem:[#allocation9 + $0x60] sm:$0xff]
    %v394 = vld [vmem:[#allocation9 + $0x68] sm:$0xff]
    %v395 = vld [vmem:[#allocation9 + $0x70] sm:$0xff]
    %v396 = vld [vmem:[#allocation9 + $0x78] sm:$0xff]
    %v397 = vld [vmem:[#allocation10] sm:$0x1]
    %v399 = vlaneseq
    %v400 = vshrl.u32 %v399, 7
    %v401 = vsub.s32 0, %v400
    %v402 = vrot.slane %v397, %v401
    %404 = vmatprep.subr.mxu0 0.0
    %405 = vmatpush1.msra.mxu0 %v381
    %406 = vmatprep.subr.mxu0 0.0
    %407 = vmatpush1.msra.mxu0 %v382
    %408 = vmatprep.subr.mxu0 0.0
    %409 = vmatpush1.msra.mxu0 %v383
    %410 = vmatprep.subr.mxu0 0.0
    %411 = vmatpush1.msra.mxu0 %v384
    %412 = vmatprep.subr.mxu0 0.0
    %413 = vmatpush1.msra.mxu0 %v385
    %414 = vmatprep.subr.mxu0 0.0
    %415 = vmatpush1.msra.mxu0 %v386
    %416 = vmatprep.subr.mxu0 0.0
    %417 = vmatpush1.msra.mxu0 %v387
    %418 = vmatprep.subr.mxu0 0.0
    %419 = vmatpush1.msra.mxu0 %v388
    %420 = vmatprep.subr.mxu0 0.0
    %421 = vmatpush1.msra.mxu0 %v389
    %422 = vmatprep.subr.mxu0 0.0
    %423 = vmatpush1.msra.mxu0 %v390
    %424 = vmatprep.subr.mxu0 0.0
    %425 = vmatpush1.msra.mxu0 %v391
    %426 = vmatprep.subr.mxu0 0.0
    %427 = vmatpush1.msra.mxu0 %v392
    %428 = vmatprep.subr.mxu0 0.0
    %429 = vmatpush1.msra.mxu0 %v393
    %430 = vmatprep.subr.mxu0 0.0
    %431 = vmatpush1.msra.mxu0 %v394
    %432 = vmatprep.subr.mxu0 0.0
    %433 = vmatpush1.msra.mxu0 %v395
    %434 = vmatprep.subr.mxu0 0.0
    %435 = vmatpush1.msra.mxu0 %v396
    %436 = vmatprep.subr.mxu0 0.0
    %437 = vmatpush1.msra.mxu0 0.0
    %438 = vmatprep.subr.mxu0 0.0
    %439 = vmatpush1.msra.mxu0 0.0
    %440 = vmatprep.subr.mxu0 0.0
    %441 = vmatpush1.msra.mxu0 0.0
    %442 = vmatprep.subr.mxu0 0.0
    %443 = vmatpush1.msra.mxu0 0.0
    %444 = vmatprep.subr.mxu0 0.0
    %445 = vmatpush1.msra.mxu0 0.0
    %446 = vmatprep.subr.mxu0 0.0
    %447 = vmatpush1.msra.mxu0 0.0
    %448 = vmatprep.subr.mxu0 0.0
    %449 = vmatpush1.msra.mxu0 0.0
    %450 = vmatprep.subr.mxu0 0.0
    %451 = vmatpush1.msra.mxu0 0.0
    %452 = vmatprep.subr.mxu0 0.0
    %453 = vmatpush1.msra.mxu0 0.0
    %454 = vmatprep.subr.mxu0 0.0
    %455 = vmatpush1.msra.mxu0 0.0
    %456 = vmatprep.subr.mxu0 0.0
    %457 = vmatpush1.msra.mxu0 0.0
    %458 = vmatprep.subr.mxu0 0.0
    %459 = vmatpush1.msra.mxu0 0.0
    %460 = vmatprep.subr.mxu0 0.0
    %461 = vmatpush1.msra.mxu0 0.0
    %462 = vmatprep.subr.mxu0 0.0
    %463 = vmatpush1.msra.mxu0 0.0
    %464 = vmatprep.subr.mxu0 0.0
    %465 = vmatpush1.msra.mxu0 0.0
    %466 = vmatprep.subr.mxu0 0.0
    %467 = vmatpush1.msra.mxu0 0.0
    %468 = vmatprep.mubr.f32.mxu0 0.0
    %469 = vmatmul.mubr.f32.gmra.mrb[0].mxu0 %v380
    %v470 = vpop.f32.mrb[0].mxu0
    %v471 = vadd.f32 %v402, %v470
    %v472 = vpop.f32.mrb[0].mxu0
    %473 = vdwg.mxu0
    %v474 = vlaneseq
    %v475 = vand.u32 %v474, 127
    %vm476 = vcmp.lt.s32.totalorder %v475, 4
    %vm477 = vcmp.ge.s32.totalorder %v475, 4
    %vm478 = vcmp.lt.s32.totalorder %v475, 16
    %vm479 = vmand %vm477, %vm478
    %vm480 = vcmp.ge.s32.totalorder %v475, 16
    %vm481 = vcmp.lt.s32.totalorder %v475, 28
    %vm482 = vmand %vm480, %vm481
    %v483 = vsel %vm476, 1, 0
    %vm484 = vcmp.eq.s32.totalorder %v483, 1
    %v485 = vsel %vm484, %v471, -inf
    %486 = vmax.xlane.f32.xlu0 %v485
    %v487 = vpop.xlane.xlu0 %486
    %v488 = vsub.f32 %v485, %v487
    %v489 = vmul.f32 %v488, 1.442695
    %v490 = vpow.pop %v489
    %491 = vadd.xlane.f32.xlu0 %v490
    %v492 = vpop.xlane.xlu0 %491
    %v493 = vrcp.pop %v492
    %v494 = vmul.f32 %v490, %v493
    %v495 = vsel %vm482, 1, 0
    %vm496 = vcmp.eq.s32.totalorder %v495, 1
    %v497 = vsel %vm496, %v471, -inf
    %v498 = vmul.f32 %v497, 1.442695
    %v499 = vpow.pop %v498
    %v500 = vsel %vm479, 1, 0
    %vm501 = vcmp.eq.s32.totalorder %v500, 1
    %v502 = vsel %vm501, %v471, 0.0
    %v503 = vadd.f32 %v494, %v502
    %v504 = vadd.f32 %v503, %v499
    %505 = vxpose.xlu0.b32.start [1/16] %v504, 128
    %506 = vxpose.xlu0.b32.cont [2/16] 0.0, 128
    %507 = vxpose.xlu0.b32.cont [3/16] 0.0, 128
    %508 = vxpose.xlu0.b32.cont [4/16] 0.0, 128
    %509 = vxpose.xlu0.b32.cont [5/16] 0.0, 128
    %510 = vxpose.xlu0.b32.cont [6/16] 0.0, 128
    %511 = vxpose.xlu0.b32.cont [7/16] 0.0, 128
    %512 = vxpose.xlu0.b32.cont [8/16] 0.0, 128
    %513 = vxpose.xlu0.b32.cont [9/16] 0.0, 128
    %514 = vxpose.xlu0.b32.cont [10/16] 0.0, 128
    %515 = vxpose.xlu0.b32.cont [11/16] 0.0, 128
    %516 = vxpose.xlu0.b32.cont [12/16] 0.0, 128
    %517 = vxpose.xlu0.b32.cont [13/16] 0.0, 128
    %518 = vxpose.xlu0.b32.cont [14/16] 0.0, 128
    %519 = vxpose.xlu0.b32.cont [15/16] 0.0, 128
    %520 = vxpose.xlu0.b32.end [16/16] 0.0, 128
    %v521 = vpop.trf.xlu0
    %v522 = vpop.trf.xlu0
    %v523 = vpop.trf.xlu0
    %v524 = vpop.trf.xlu0
    %v525 = vpop.trf.xlu0
    %v526 = vpop.trf.xlu0
    %v527 = vpop.trf.xlu0
    %v528 = vpop.trf.xlu0
    %v529 = vpop.trf.xlu0
    %v530 = vpop.trf.xlu0
    %v531 = vpop.trf.xlu0
    %v532 = vpop.trf.xlu0
    %v533 = vpop.trf.xlu0
    %v534 = vpop.trf.xlu0
    %v535 = vpop.trf.xlu0
    %v536 = vpop.trf.xlu0
    %vm537 = vcmask 64512
    %538 = vst.msk [vmem:[%s9] sm:$0xff] %vm537, %v521
    %539 = vst.msk [vmem:[%s9 + $0x8] sm:$0xff] %vm537, %v522
    %540 = vst.msk [vmem:[%s9 + $0x10] sm:$0xff] %vm537, %v523
    %541 = vst.msk [vmem:[%s9 + $0x18] sm:$0xff] %vm537, %v524
    // Predicated region
    $region62: #{mdn_decay_net_forward.1} parent=1 // pred_check
      _
    $region63: #{mdn_decay_net_forward.1} parent=1 // pred_check_branch
      %543 = sbr.rel (0) target = $region65
    $region64: #{mdn_decay_net_forward.1} parent=1 // pred_region
      _
    $region65: #{mdn_decay_net_forward.1} parent=1 // pred_fallthru
      _
    // Predicated region
    $region66: #{mdn_decay_net_forward.1} parent=1 // pred_check
      _
    $region67: #{mdn_decay_net_forward.1} parent=1 // pred_check_branch
      %545 = sbr.rel (0) target = $region69
    $region68: #{mdn_decay_net_forward.1} parent=1 // pred_region
      _
    $region69: #{mdn_decay_net_forward.1} parent=1 // pred_fallthru
      _
    %546 = vsyncpa [#allocation3], 1
    %547 = vsyncpa [#allocation5], 1
    %548 = vsyncpa [#allocation8], 1
    %549 = vsyncpa [#allocation11], 1

</llo_original>
